<compile_context>
chip_gen: v7x
topology: tpu7x:2x2x1
jax: 0.10.0
libtpu: 0.0.40
codegen_flags: <defaults>
</compile_context>

<pallas_src>
import jax
import jax.numpy as jnp
from jax.experimental import pallas as pl
from jax.experimental.pallas import tpu as pltpu


def _round_up(x, m):
    return (x + m - 1) // m * m


def _conv_pooler_kernel(h_ref, w_ref, b_ref, o_ref):
    # h_ref: (TM, D) VMEM (native dtype), w_ref: (D, 1) VMEM (native dtype),
    # b_ref: (1, 1) SMEM f32 scalar, o_ref: (TM, 1) VMEM f32.
    acc = jnp.dot(h_ref[...], w_ref[...], preferred_element_type=jnp.float32)
    o_ref[...] = acc + b_ref[0, 0]


def conv_pooler_short(h, weight, bias, tm=None):
    """h: (B, L, D); weight: (D,); bias: scalar ()  ->  (B, L) float32."""
    B, L, D = h.shape
    M = B * L
    in_dtype = h.dtype
    itemsize = jnp.dtype(in_dtype).itemsize

    # Row-tile size: largest multiple of 8 such that one h tile is <= ~4 MiB
    # (so 2x double-buffered tiles fit comfortably in v7x's VMEM), clamped to
    # [8, 2048] and to the (padded) number of rows.
    if tm is None:
        budget_bytes = 4 * 1024 * 1024
        tm = budget_bytes // max(1, D * itemsize)
    tm = max(8, min(2048, (int(tm) // 8) * 8))
    tm = min(tm, _round_up(M, 8))

    grid = (pl.cdiv(M, tm),)

    h2d = h.reshape(M, D)                      # view, no copy, native dtype
    w2d = weight.reshape(D, 1).astype(in_dtype)
    b2d = jnp.asarray(bias, jnp.float32).reshape(1, 1)

    # Scoped VMEM: double-buffered h tile + double-buffered output tile +
    # resident weight + headroom. Cap well under v7x's 64 MiB.
    vmem_bytes = 2 * tm * D * itemsize + 2 * tm * 4 + 2 * D * 4 + (2 << 20)
    vmem_bytes = int(min(max(vmem_bytes, 4 << 20), 48 << 20))

    out = pl.pallas_call(
        _conv_pooler_kernel,
        out_shape=jax.ShapeDtypeStruct((M, 1), jnp.float32),
        grid=grid,
        in_specs=[
            pl.BlockSpec((tm, D), lambda i: (i, 0)),      # streamed row tiles
            pl.BlockSpec((D, 1), lambda i: (0, 0)),       # resident weight
            pl.BlockSpec(memory_space=pltpu.SMEM),        # bias scalar
        ],
        out_specs=pl.BlockSpec((tm, 1), lambda i: (i, 0)),
        compiler_params=pltpu.CompilerParams(
            dimension_semantics=("parallel",),
            vmem_limit_bytes=vmem_bytes,
        ),
    )(h2d, w2d, b2d)

    return out.reshape(B, L)


if __name__ == "__main__":
    key = jax.random.PRNGKey(0)
    k_h, k_w, k_b, k_h2 = jax.random.split(key, 4)

    # --- Check 1: small shapes matching the module (single tile) ---
    B, L, DIM = 2, 8, 32
    h = jax.random.normal(k_h, (B, L, DIM), dtype=jnp.float32)
    weight = jax.random.normal(k_w, (DIM,), dtype=jnp.float32) * 0.1
    bias = jax.random.normal(k_b, (), dtype=jnp.float32) * 0.1

    out = conv_pooler_short(h, weight, bias)
    out = jax.block_until_ready(out)

    ref = jnp.einsum("bld,d->bl", h, weight) + bias
    assert out.shape == (B, L)
    assert jnp.allclose(out, ref, atol=1e-5, rtol=1e-5), "mismatch vs reference (check 1)"

    # --- Check 2: force a multi-tile grid with a partial last tile ---
    B2, L2 = 2, 100                     # M = 200, tm = 64 -> grid of 4, last tile partial
    h2 = jax.random.normal(k_h2, (B2, L2, DIM), dtype=jnp.float32)
    out2 = conv_pooler_short(h2, weight, bias, tm=64)
    out2 = jax.block_until_ready(out2)

    ref2 = jnp.einsum("bld,d->bl", h2, weight) + bias
    assert out2.shape == (B2, L2)
    assert jnp.allclose(out2, ref2, atol=1e-5, rtol=1e-5), "mismatch vs reference (check 2)"

    print("KERNEL_OK")
</pallas_src>

<mosaic_0001>
module attributes {stable_mosaic.version = 11 : i64} {
  func.func @_conv_pooler_kernel(%arg0: i32, %arg1: memref<16x32xf32, #tpu.memory_space<vmem>>, %arg2: memref<32x1xf32, #tpu.memory_space<vmem>>, %arg3: memref<1x1xf32, #tpu.memory_space<smem>>, %arg4: memref<16x1xf32, #tpu.memory_space<vmem>>) attributes {dimension_semantics = [#tpu.dimension_semantics<parallel>], iteration_bounds = array<i64: 1>, scalar_prefetch = 0 : i64, scratch_operands = 0 : i64, tpu.core_type = #tpu.core_type<tc>, window_params = [{transform_indices = @transform_0, window_bounds = array<i64: 16, 32>}, {pipeline_mode = #tpu.pipeline_mode<synchronous>, transform_indices = @transform_1, window_bounds = array<i64: 32, 1>}, {transform_indices = @transform_2, window_bounds = array<i64: 1, 1>}, {transform_indices = @transform_3, window_bounds = array<i64: 16, 1>}]} {
    %c0 = arith.constant 0 : index
    %c0_0 = arith.constant 0 : index
    %0 = vector.load %arg1[%c0, %c0_0] : memref<16x32xf32, #tpu.memory_space<vmem>>, vector<16x32xf32>
    %c0_1 = arith.constant 0 : index
    %c0_2 = arith.constant 0 : index
    %1 = vector.load %arg2[%c0_1, %c0_2] : memref<32x1xf32, #tpu.memory_space<vmem>>, vector<32x1xf32>
    %cst = arith.constant dense<0.000000e+00> : vector<16x1xf32>
    %2 = tpu.matmul %0, %1, %cst {dimension_numbers = #tpu.dot_dimension_numbers<[1], [0], [0], [1], [0, 0, 1, 1], [], []>} : vector<16x32xf32>, vector<32x1xf32>, vector<16x1xf32> -> vector<16x1xf32>
    %c0_3 = arith.constant 0 : index
    %c0_4 = arith.constant 0 : index
    %3 = memref.load %arg3[%c0_3, %c0_4] : memref<1x1xf32, #tpu.memory_space<smem>>
    %4 = vector.broadcast %3 : f32 to vector<16x1xf32>
    %5 = arith.addf %2, %4 : vector<16x1xf32>
    %c0_5 = arith.constant 0 : index
    %c0_6 = arith.constant 0 : index
    %6 = vector.load %arg4[%c0_5, %c0_6] : memref<16x1xf32, #tpu.memory_space<vmem>>, vector<16x1xf32>
    tpu.vector_store %arg4[%c0_5, %c0_6], %5 {strides = array<i32>} : memref<16x1xf32, #tpu.memory_space<vmem>>, vector<16x1xf32>,
    return
  }
  func.func @transform_0(%arg0: i32) -> (i32, i32) {
    %c0_i32 = arith.constant 0 : i32
    %c0_i32_0 = arith.constant 0 : i32
    return %arg0, %c0_i32 : i32, i32
  }
  func.func @transform_1(%arg0: i32) -> (i32, i32) {
    %c0_i32 = arith.constant 0 : i32
    %c0_i32_0 = arith.constant 0 : i32
    %c0_i32_1 = arith.constant 0 : i32
    return %c0_i32, %c0_i32_0 : i32, i32
  }
  func.func @transform_2(%arg0: i32) -> (i32, i32) {
    %c0_i32 = arith.constant 0 : i32
    %c0_i32_0 = arith.constant 0 : i32
    %c0_i32_1 = arith.constant 0 : i32
    return %c0_i32, %c0_i32_0 : i32, i32
  }
  func.func @transform_3(%arg0: i32) -> (i32, i32) {
    %c0_i32 = arith.constant 0 : i32
    %c0_i32_0 = arith.constant 0 : i32
    return %arg0, %c0_i32 : i32, i32
  }
}

</mosaic_0001>

<llo_original>
// kernel: tpu_custom_call.1
$region0: #{tpu_custom_call.1}
  #allocation0 [shape = 'u32[]', space=smem, size = 0x4, offset = 0x4, fixed_abs, tag = 'smem constant byte address 0x4 - core index']
  #allocation1 [shape = 'u32[144,128]{1,0:T(1,128)}', space=vmem, size = 0x12000, scoped, tag = 'internal scratch']
  #allocation2 [shape = 'f32[1,1]{1,0:T(1,128)S(6)}', space=smem, size = 0x200, scoped, tag = 'scoped memory for tpu_custom_call.1']
  %s0 = inlined_call_operand.vmem [shape: f32[16,32], index: 0, kind: input, shape index: {}]
  %s1 = inlined_call_operand.vmem [shape: f32[32,1], index: 1, kind: input, shape index: {}]
  %s2 = inlined_call_operand.<no memory space> [shape: f32[1,1], index: 2, kind: input, shape index: {}]
  %s3 = inlined_call_operand.vmem [shape: f32[16,1], index: 3, kind: output, shape index: {}]
  %s4 = sld [smem:[#allocation0]]
  $region22: #{tpu_custom_call.1} parent=0
    _
  %s6 = ssub.s32 1, %s4
  %s7 = scalar_select 0, %s6, %s4
  %8 = sst [smem:[#allocation2]] %s2
  // Predicated region
  $region2: #{tpu_custom_call.1} parent=0 // pred_check
    _
  $region3: #{tpu_custom_call.1} parent=0 // pred_check_branch
    %10 = sbr.rel (0) target = $region5
  $region4: #{tpu_custom_call.1} parent=0 // pred_region
    _
  $region5: #{tpu_custom_call.1} parent=0 // pred_fallthru
    _
  // Predicated region
  $region6: #{tpu_custom_call.1} parent=0 // pred_check
    _
  $region7: #{tpu_custom_call.1} parent=0 // pred_check_branch
    %12 = sbr.rel (0) target = $region9
  $region8: #{tpu_custom_call.1} parent=0 // pred_region
    _
  $region9: #{tpu_custom_call.1} parent=0 // pred_fallthru
    _
  // Predicated region
  $region10: #{tpu_custom_call.1} parent=0 // pred_check
    _
  $region11: #{tpu_custom_call.1} parent=0 // pred_check_branch
    %14 = sbr.rel (0) target = $region13
  $region12: #{tpu_custom_call.1} parent=0 // pred_region
    _
  $region13: #{tpu_custom_call.1} parent=0 // pred_fallthru
    _
  %v15 = vld [vmem:[%s0] sm:$0xff]
  %v16 = vld [vmem:[%s0 + $0x8] sm:$0xff]
  %v17 = vld [vmem:[%s1] sm:$0xff]
  %v18 = vld [vmem:[%s1 + $0x8] sm:$0xff]
  %v19 = vld [vmem:[%s1 + $0x10] sm:$0xff]
  %v20 = vld [vmem:[%s1 + $0x18] sm:$0xff]
  %s21 = sld [smem:[#allocation2]]
  %v22 = vstv %s21
  %vm23 = vcmask 261120
  %v25 = vsel %vm23, %v15, 0
  %v28 = vsel %vm23, %v16, 0
  %30 = vmatprep.subr.mxu0 0.0
  %31 = vmatpush1.msra.mxu0 %v17
  %32 = vmatprep.subr.mxu0 0.0
  %33 = vmatpush1.msra.mxu0 %v18
  %34 = vmatprep.subr.mxu0 0.0
  %35 = vmatpush1.msra.mxu0 %v19
  %36 = vmatprep.subr.mxu0 0.0
  %37 = vmatpush1.msra.mxu0 %v20
  %38 = vmatprep.subr.mxu0 0.0
  %39 = vmatpush1.msra.mxu0 0.0
  %40 = vmatprep.subr.mxu0 0.0
  %41 = vmatpush1.msra.mxu0 0.0
  %42 = vmatprep.subr.mxu0 0.0
  %43 = vmatpush1.msra.mxu0 0.0
  %44 = vmatprep.subr.mxu0 0.0
  %45 = vmatpush1.msra.mxu0 0.0
  %46 = vmatprep.subr.mxu0 0.0
  %47 = vmatpush1.msra.mxu0 0.0
  %48 = vmatprep.subr.mxu0 0.0
  %49 = vmatpush1.msra.mxu0 0.0
  %50 = vmatprep.subr.mxu0 0.0
  %51 = vmatpush1.msra.mxu0 0.0
  %52 = vmatprep.subr.mxu0 0.0
  %53 = vmatpush1.msra.mxu0 0.0
  %54 = vmatprep.subr.mxu0 0.0
  %55 = vmatpush1.msra.mxu0 0.0
  %56 = vmatprep.subr.mxu0 0.0
  %57 = vmatpush1.msra.mxu0 0.0
  %58 = vmatprep.subr.mxu0 0.0
  %59 = vmatpush1.msra.mxu0 0.0
  %60 = vmatprep.subr.mxu0 0.0
  %61 = vmatpush1.msra.mxu0 0.0
  %62 = vmatprep.subr.mxu0 0.0
  %63 = vmatpush1.msra.mxu0 0.0
  %64 = vmatprep.subr.mxu0 0.0
  %65 = vmatpush1.msra.mxu0 0.0
  %66 = vmatprep.subr.mxu0 0.0
  %67 = vmatpush1.msra.mxu0 0.0
  %68 = vmatprep.subr.mxu0 0.0
  %69 = vmatpush1.msra.mxu0 0.0
  %70 = vmatprep.subr.mxu0 0.0
  %71 = vmatpush1.msra.mxu0 0.0
  %72 = vmatprep.subr.mxu0 0.0
  %73 = vmatpush1.msra.mxu0 0.0
  %74 = vmatprep.subr.mxu0 0.0
  %75 = vmatpush1.msra.mxu0 0.0
  %76 = vmatprep.subr.mxu0 0.0
  %77 = vmatpush1.msra.mxu0 0.0
  %78 = vmatprep.subr.mxu0 0.0
  %79 = vmatpush1.msra.mxu0 0.0
  %80 = vmatprep.subr.mxu0 0.0
  %81 = vmatpush1.msra.mxu0 0.0
  %82 = vmatprep.subr.mxu0 0.0
  %83 = vmatpush1.msra.mxu0 0.0
  %84 = vmatprep.subr.mxu0 0.0
  %85 = vmatpush1.msra.mxu0 0.0
  %86 = vmatprep.subr.mxu0 0.0
  %87 = vmatpush1.msra.mxu0 0.0
  %88 = vmatprep.subr.mxu0 0.0
  %89 = vmatpush1.msra.mxu0 0.0
  %90 = vmatprep.subr.mxu0 0.0
  %91 = vmatpush1.msra.mxu0 0.0
  %92 = vmatprep.subr.mxu0 0.0
  %93 = vmatpush1.msra.mxu0 0.0
  %94 = vmatprep.mubr.f32.mxu0 0.0
  %95 = vmatmul.mubr.f32.gmra.mrb[0].mxu0 %v25
  %v96 = vpop.f32.mrb[0].mxu0
  %v97 = vadd.f32 %v22, %v96
  %v98 = vpop.f32.mrb[0].mxu0
  %99 = vmatprep.mubr.f32.mxu0 0.0
  %100 = vmatmul.mubr.f32.gmra.mrb[0].mxu0 %v28
  %v101 = vpop.f32.mrb[0].mxu0
  %v102 = vadd.f32 %v22, %v101
  %v103 = vpop.f32.mrb[0].mxu0
  %104 = vdwg.mxu0
  %vm105 = vcmask 7168
  %106 = vst.msk [vmem:[%s3] sm:$0xff] %vm105, %v97
  %107 = vst.msk [vmem:[%s3 + $0x8] sm:$0xff] %vm105, %v102
  // Predicated region
  $region14: #{tpu_custom_call.1} parent=0 // pred_check
    _
  $region15: #{tpu_custom_call.1} parent=0 // pred_check_branch
    %109 = sbr.rel (0) target = $region17
  $region16: #{tpu_custom_call.1} parent=0 // pred_region
    _
  $region17: #{tpu_custom_call.1} parent=0 // pred_fallthru
    _
  // Predicated region
  $region18: #{tpu_custom_call.1} parent=0 // pred_check
    _
  $region19: #{tpu_custom_call.1} parent=0 // pred_check_branch
    %111 = sbr.rel (0) target = $region21
  $region20: #{tpu_custom_call.1} parent=0 // pred_region
    _
  $region21: #{tpu_custom_call.1} parent=0 // pred_fallthru
    _

</llo_original>
